<compile_context>
chip_gen: v5e
topology: v5e:2x2
jax: 0.10.0
libtpu: 0.0.40
codegen_flags: <defaults>
</compile_context>

<pallas_src>
import functools

import jax
import jax.numpy as jnp
from jax.experimental import pallas as pl
from jax.experimental.pallas import tpu as pltpu


def _round_up(n, m):
    return ((n + m - 1) // m) * m


def mlp_kernel(x_ref, w1_ref, b1_ref, w2_ref, b2_ref, o_ref):
    # layer1: x @ W1 + b1, ReLU.  Hidden dim is lane-padded to a multiple of
    # 128, so the bias add / max and the second matmul's K feed are unmasked.
    h = jnp.dot(x_ref[...], w1_ref[...], preferred_element_type=jnp.float32)
    h = jnp.maximum(h + b1_ref[...], 0.0)
    # layer2: h @ W2 + b2.  astype is a no-op in the f32 path; in the bf16
    # path it casts the activation to match the bf16 weights for the MXU.
    y = jnp.dot(h.astype(w2_ref.dtype), w2_ref[...],
                preferred_element_type=jnp.float32)
    o_ref[...] = (y + b2_ref[...]).astype(o_ref.dtype)


def pad_linear_params(w1, b1, w2, b2):
    """Zero-pad hidden and output feature dims to multiples of 128 lanes.

    Call ONCE at parameter-load time (outside the per-step hot path).
    Exact: padded columns/rows are zero and padded outputs are sliced off.
    """
    in_f, hid = w1.shape
    hid2, out_f = w2.shape
    assert hid == hid2 and b1.shape == (hid,) and b2.shape == (out_f,)
    hid_p = _round_up(hid, 128)
    out_p = _round_up(out_f, 128)
    w1p = jnp.zeros((in_f, hid_p), w1.dtype).at[:, :hid].set(w1)
    b1p = jnp.zeros((1, hid_p), b1.dtype).at[0, :hid].set(b1)
    w2p = jnp.zeros((hid_p, out_p), w2.dtype).at[:hid, :out_f].set(w2)
    b2p = jnp.zeros((1, out_p), b2.dtype).at[0, :out_f].set(b2)
    return w1p, b1p, w2p, b2p


@functools.partial(
    jax.jit, static_argnames=("out_features", "batch_tile", "use_bf16_matmul"))
def dummy_model_finetune_padded(x, w1p, b1p, w2p, b2p, *, out_features,
                                batch_tile=512, use_bf16_matmul=False):
    """Forward pass on lane-padded params (from pad_linear_params).

    x    : (B, in_features)               f32
    w1p  : (in_features, hidden_pad)      hidden_pad % 128 == 0
    b1p  : (1, hidden_pad)
    w2p  : (hidden_pad, out_pad)          out_pad % 128 == 0
    b2p  : (1, out_pad)
    Returns (B, out_features).
    """
    B, in_f = x.shape
    hid_p = w1p.shape[1]
    out_p = w2p.shape[1]
    out_dtype = x.dtype

    # Batch tiling: rows per block is a multiple of 8 (sublane), capped at
    # batch_tile; pad the batch with zero rows so the grid divides evenly.
    b_sub = _round_up(B, 8)
    tile = min(batch_tile, b_sub)
    b_pad = _round_up(b_sub, tile)
    if b_pad != B:
        x = jnp.zeros((b_pad, in_f), x.dtype).at[:B].set(x)

    if use_bf16_matmul:
        # Production-scale lever for v6e/v7x MXU throughput; biases and the
        # epilogue stay f32, accumulation stays f32.
        x = x.astype(jnp.bfloat16)
        w1p = w1p.astype(jnp.bfloat16)
        w2p = w2p.astype(jnp.bfloat16)

    grid = (b_pad // tile,)

    # Scheduler hint for XLA around the custom call.
    flops = 2 * b_pad * (in_f * hid_p + hid_p * out_p)
    bytes_accessed = int(
        x.size * x.dtype.itemsize
        + w1p.size * w1p.dtype.itemsize + b1p.size * b1p.dtype.itemsize
        + w2p.size * w2p.dtype.itemsize + b2p.size * b2p.dtype.itemsize
        + b_pad * out_p * jnp.dtype(out_dtype).itemsize)
    cost = pl.CostEstimate(flops=flops, transcendentals=0,
                           bytes_accessed=bytes_accessed)

    # VMEM budget: double-buffered x/out tiles + resident (constant index_map)
    # weights/biases, with 2x headroom; capped at 32 MiB (safe vs. v7x's
    # 64 MiB physical / 32 MiB scoped default, and above v5e's 16 MiB default
    # when big batch tiles need it).
    block_bytes = 4 * (tile * in_f + tile * out_p
                       + in_f * hid_p + hid_p + hid_p * out_p + out_p)
    vmem_limit = int(min(max(4 * block_bytes, 4 << 20), 32 << 20))

    y = pl.pallas_call(
        mlp_kernel,
        out_shape=jax.ShapeDtypeStruct((b_pad, out_p), out_dtype),
        grid=grid,
        in_specs=[
            pl.BlockSpec((tile, in_f), lambda i: (i, 0)),   # x: tiled over batch
            pl.BlockSpec((in_f, hid_p), lambda i: (0, 0)),  # W1: resident
            pl.BlockSpec((1, hid_p), lambda i: (0, 0)),     # b1: resident
            pl.BlockSpec((hid_p, out_p), lambda i: (0, 0)), # W2: resident
            pl.BlockSpec((1, out_p), lambda i: (0, 0)),     # b2: resident
        ],
        out_specs=pl.BlockSpec((tile, out_p), lambda i: (i, 0)),
        compiler_params=pltpu.CompilerParams(
            # "parallel" batch axis -> grid steps shard across v7x's 2 TCs;
            # no-op on v5e/v6e (1 TC).
            dimension_semantics=("parallel",),
            vmem_limit_bytes=vmem_limit,
        ),
        cost_estimate=cost,
    )(x, w1p, b1p, w2p, b2p)

    return y[:B, :out_features]


def dummy_model_finetune(x, w1, b1, w2, b2, **kwargs):
    """Convenience wrapper for unpadded params (pads on every call — prefer
    pad_linear_params once + dummy_model_finetune_padded in a real loop)."""
    w1p, b1p, w2p, b2p = pad_linear_params(w1, b1, w2, b2)
    return dummy_model_finetune_padded(x, w1p, b1p, w2p, b2p,
                                       out_features=w2.shape[1], **kwargs)


# NOTE: at ~49 KFLOPs this forward is launch-bound no matter what; in
# production either let XLA fuse the two dots + ReLU, or batch many requests
# into one call so the gridded batch axis (>=128 rows per MXU push on v5e,
# >=256 on v6e/v7x) actually fills the systolic array.
if __name__ == "__main__":
    # Small shapes consistent with the module's forward:
    # in_features=32, hidden_features=64, out_features=16, batch=8
    B, IN, HID, OUT = 8, 32, 64, 16

    key = jax.random.PRNGKey(0)
    kx, kw1, kb1, kw2, kb2 = jax.random.split(key, 5)

    x = jax.random.normal(kx, (B, IN), dtype=jnp.float32)
    # Deterministic parameter init (kaiming-uniform-ish scale, like nn.Linear).
    w1 = jax.random.uniform(kw1, (IN, HID), dtype=jnp.float32,
                            minval=-1.0, maxval=1.0) / jnp.sqrt(IN)
    b1 = jax.random.uniform(kb1, (HID,), dtype=jnp.float32,
                            minval=-1.0, maxval=1.0) / jnp.sqrt(IN)
    w2 = jax.random.uniform(kw2, (HID, OUT), dtype=jnp.float32,
                            minval=-1.0, maxval=1.0) / jnp.sqrt(HID)
    b2 = jax.random.uniform(kb2, (OUT,), dtype=jnp.float32,
                            minval=-1.0, maxval=1.0) / jnp.sqrt(HID)

    # Pad parameters ONCE (outside the jitted hot path), then run the kernel.
    w1p, b1p, w2p, b2p = pad_linear_params(w1, b1, w2, b2)
    w1p, b1p, w2p, b2p = jax.block_until_ready((w1p, b1p, w2p, b2p))

    out = dummy_model_finetune_padded(x, w1p, b1p, w2p, b2p, out_features=OUT)
    out = jax.block_until_ready(out)

    # Reference check in plain JAX (same math as the PyTorch forward).
    ref = jnp.maximum(x @ w1 + b1, 0.0) @ w2 + b2
    assert out.shape == (B, OUT)
    assert jnp.allclose(out, ref, atol=1e-5, rtol=1e-5)

    print("KERNEL_OK")
</pallas_src>

<mosaic_0001>
module attributes {stable_mosaic.version = 11 : i64} {
  func.func @mlp_kernel(%arg0: i32, %arg1: memref<8x32xf32, #tpu.memory_space<vmem>>, %arg2: memref<32x128xf32, #tpu.memory_space<vmem>>, %arg3: memref<1x128xf32, #tpu.memory_space<vmem>>, %arg4: memref<128x128xf32, #tpu.memory_space<vmem>>, %arg5: memref<1x128xf32, #tpu.memory_space<vmem>>, %arg6: memref<8x128xf32, #tpu.memory_space<vmem>>) attributes {dimension_semantics = [#tpu.dimension_semantics<parallel>], iteration_bounds = array<i64: 1>, scalar_prefetch = 0 : i64, scratch_operands = 0 : i64, tpu.core_type = #tpu.core_type<tc>, window_params = [{transform_indices = @transform_0, window_bounds = array<i64: 8, 32>}, {pipeline_mode = #tpu.pipeline_mode<synchronous>, transform_indices = @transform_1, window_bounds = array<i64: 32, 128>}, {pipeline_mode = #tpu.pipeline_mode<synchronous>, transform_indices = @transform_2, window_bounds = array<i64: 1, 128>}, {pipeline_mode = #tpu.pipeline_mode<synchronous>, transform_indices = @transform_3, window_bounds = array<i64: 128, 128>}, {pipeline_mode = #tpu.pipeline_mode<synchronous>, transform_indices = @transform_4, window_bounds = array<i64: 1, 128>}, {transform_indices = @transform_5, window_bounds = array<i64: 8, 128>}]} {
    %c0 = arith.constant 0 : index
    %c0_0 = arith.constant 0 : index
    %0 = vector.load %arg1[%c0, %c0_0] : memref<8x32xf32, #tpu.memory_space<vmem>>, vector<8x32xf32>
    %c0_1 = arith.constant 0 : index
    %c0_2 = arith.constant 0 : index
    %1 = vector.load %arg2[%c0_1, %c0_2] : memref<32x128xf32, #tpu.memory_space<vmem>>, vector<32x128xf32>
    %cst = arith.constant dense<0.000000e+00> : vector<8x128xf32>
    %2 = tpu.matmul %0, %1, %cst {dimension_numbers = #tpu.dot_dimension_numbers<[1], [0], [0], [1], [0, 0, 1, 1], [], []>} : vector<8x32xf32>, vector<32x128xf32>, vector<8x128xf32> -> vector<8x128xf32>
    %c0_3 = arith.constant 0 : index
    %c0_4 = arith.constant 0 : index
    %3 = vector.load %arg3[%c0_3, %c0_4] : memref<1x128xf32, #tpu.memory_space<vmem>>, vector<1x128xf32>
    %4 = vector.broadcast %3 : vector<1x128xf32> to vector<8x128xf32>
    %5 = arith.addf %2, %4 : vector<8x128xf32>
    %cst_5 = arith.constant 0.000000e+00 : f32
    %6 = vector.broadcast %cst_5 : f32 to vector<8x128xf32>
    %7 = arith.maximumf %5, %6 : vector<8x128xf32>
    %c0_6 = arith.constant 0 : index
    %c0_7 = arith.constant 0 : index
    %8 = vector.load %arg4[%c0_6, %c0_7] : memref<128x128xf32, #tpu.memory_space<vmem>>, vector<128x128xf32>
    %cst_8 = arith.constant dense<0.000000e+00> : vector<8x128xf32>
    %9 = tpu.matmul %7, %8, %cst_8 {dimension_numbers = #tpu.dot_dimension_numbers<[1], [0], [0], [1], [0, 0, 1, 1], [], []>} : vector<8x128xf32>, vector<128x128xf32>, vector<8x128xf32> -> vector<8x128xf32>
    %c0_9 = arith.constant 0 : index
    %c0_10 = arith.constant 0 : index
    %10 = vector.load %arg5[%c0_9, %c0_10] : memref<1x128xf32, #tpu.memory_space<vmem>>, vector<1x128xf32>
    %11 = vector.broadcast %10 : vector<1x128xf32> to vector<8x128xf32>
    %12 = arith.addf %9, %11 : vector<8x128xf32>
    %c0_11 = arith.constant 0 : index
    %c0_12 = arith.constant 0 : index
    %13 = vector.load %arg6[%c0_11, %c0_12] : memref<8x128xf32, #tpu.memory_space<vmem>>, vector<8x128xf32>
    tpu.vector_store %arg6[%c0_11, %c0_12], %12 {strides = array<i32>} : memref<8x128xf32, #tpu.memory_space<vmem>>, vector<8x128xf32>,
    return
  }
  func.func @transform_0(%arg0: i32) -> (i32, i32) {
    %c0_i32 = arith.constant 0 : i32
    %c0_i32_0 = arith.constant 0 : i32
    return %arg0, %c0_i32 : i32, i32
  }
  func.func @transform_1(%arg0: i32) -> (i32, i32) {
    %c0_i32 = arith.constant 0 : i32
    %c0_i32_0 = arith.constant 0 : i32
    %c0_i32_1 = arith.constant 0 : i32
    return %c0_i32, %c0_i32_0 : i32, i32
  }
  func.func @transform_2(%arg0: i32) -> (i32, i32) {
    %c0_i32 = arith.constant 0 : i32
    %c0_i32_0 = arith.constant 0 : i32
    %c0_i32_1 = arith.constant 0 : i32
    return %c0_i32, %c0_i32_0 : i32, i32
  }
  func.func @transform_3(%arg0: i32) -> (i32, i32) {
    %c0_i32 = arith.constant 0 : i32
    %c0_i32_0 = arith.constant 0 : i32
    %c0_i32_1 = arith.constant 0 : i32
    return %c0_i32, %c0_i32_0 : i32, i32
  }
  func.func @transform_4(%arg0: i32) -> (i32, i32) {
    %c0_i32 = arith.constant 0 : i32
    %c0_i32_0 = arith.constant 0 : i32
    %c0_i32_1 = arith.constant 0 : i32
    return %c0_i32, %c0_i32_0 : i32, i32
  }
  func.func @transform_5(%arg0: i32) -> (i32, i32) {
    %c0_i32 = arith.constant 0 : i32
    %c0_i32_0 = arith.constant 0 : i32
    return %arg0, %c0_i32 : i32, i32
  }
}

</mosaic_0001>

<llo_original>
// kernel: dummy_model_finetune_padded.1
$region0: #{dummy_model_finetune_padded.1}
  #allocation0 [shape = 'u32[]', space=smem, size = 0x4, offset = 0x4, fixed_abs, tag = 'smem constant byte address 0x4 - core index']
  #allocation1 [shape = 'u32[72,128]{1,0:T(1,128)}', space=vmem, size = 0x9000, scoped, tag = 'internal scratch']
  %s0 = inlined_call_operand.hbm [shape: f32[8,32], index: 0, kind: input, shape index: {}]
  %s1 = inlined_call_operand.hbm [shape: f32[32,128], index: 1, kind: input, shape index: {}]
  %s2 = inlined_call_operand.vmem [shape: f32[1,128], index: 2, kind: input, shape index: {}]
  %s3 = inlined_call_operand.hbm [shape: f32[128,128], index: 3, kind: input, shape index: {}]
  %s4 = inlined_call_operand.vmem [shape: f32[1,128], index: 4, kind: input, shape index: {}]
  %s5 = inlined_call_operand.hbm [shape: f32[8,128], index: 5, kind: output, shape index: {}]
  %s6 = sld [smem:[#allocation0]]
  $region42: #{dummy_model_finetune_padded.1} parent=0
    _
  %s8 = ssub.s32 1, %s6
  %s9 = scalar_select 0, %s8, %s6
  $region1: #{dummy_model_finetune_padded.1} parent=0
    #allocation2 [shape = 'u8[4096]{0}', space=vmem, size = 0x1000, scoped, tag = 'input window, operand 0, single buffered']
    #allocation3 [shape = 's32[1]{0}', space=sflag, size = 0x4, scoped, tag = 'scoped memory for dummy_model_finetune_padded.1']
    #allocation4 [shape = 's32[1]{0}', space=sflag, size = 0x4, scoped, tag = 'scoped memory for dummy_model_finetune_padded.1']
    #allocation5 [shape = 'u8[16384]{0}', space=vmem, size = 0x4000, scoped, tag = 'input window, operand 1, single buffered']
    #allocation6 [shape = 's32[1]{0}', space=sflag, size = 0x4, scoped, tag = 'scoped memory for dummy_model_finetune_padded.1']
    #allocation7 [shape = 'u8[65536]{0}', space=vmem, size = 0x10000, scoped, tag = 'input window, operand 3, single buffered']
    #allocation8 [shape = 'u8[4096]{0}', space=vmem, size = 0x1000, scoped, tag = 'output window, operand 0, single buffered']
    %10 = vsyncpa [#allocation3], 0
    %11 = vsyncpa [#allocation6], 0
    %12 = vsyncpa [#allocation4], 0
    // Predicated region
    $region2: #{dummy_model_finetune_padded.1} parent=1 // pred_check
      _
    $region3: #{dummy_model_finetune_padded.1} parent=1 // pred_check_branch
      %14 = sbr.rel (0) target = $region5
    $region4: #{dummy_model_finetune_padded.1} parent=1 // pred_region
      %16 = vsyncadd [#allocation3], 0
      %s18 = sshll.u32 %s0, 4
      %s19 = int_to_ptr.hbm [resolvable:$true] %s18
      %s20 = sshll.u32 [#allocation2], 4
      %s21 = int_to_ptr.vmem [resolvable:$true] %s20
      %23 = dma.hbm_to_vmem [thread:$0]  %s19, 128, %s21, [#allocation3]
    $region5: #{dummy_model_finetune_padded.1} parent=1 // pred_fallthru
      _
    // Predicated region
    $region6: #{dummy_model_finetune_padded.1} parent=1 // pred_check
      _
    $region7: #{dummy_model_finetune_padded.1} parent=1 // pred_check_branch
      %25 = sbr.rel (0) target = $region9
    $region8: #{dummy_model_finetune_padded.1} parent=1 // pred_region
      %27 = vsyncadd [#allocation6], 0
      %s28 = sshll.u32 %s1, 4
      %s29 = int_to_ptr.hbm [resolvable:$true] %s28
      %s30 = sshll.u32 [#allocation5], 4
      %s31 = int_to_ptr.vmem [resolvable:$true] %s30
      %36 = dma.hbm_to_vmem [thread:$0]  %s29, 512, %s31, [#allocation6], 128, 128, 8
    $region9: #{dummy_model_finetune_padded.1} parent=1 // pred_fallthru
      _
    // Predicated region
    $region10: #{dummy_model_finetune_padded.1} parent=1 // pred_check
      _
    $region11: #{dummy_model_finetune_padded.1} parent=1 // pred_check_branch
      %38 = sbr.rel (0) target = $region13
    $region12: #{dummy_model_finetune_padded.1} parent=1 // pred_region
      _
    $region13: #{dummy_model_finetune_padded.1} parent=1 // pred_fallthru
      _
    // Predicated region
    $region14: #{dummy_model_finetune_padded.1} parent=1 // pred_check
      _
    $region15: #{dummy_model_finetune_padded.1} parent=1 // pred_check_branch
      %40 = sbr.rel (0) target = $region17
    $region16: #{dummy_model_finetune_padded.1} parent=1 // pred_region
      %42 = vsyncadd [#allocation6], 0
      %s43 = sshll.u32 %s3, 4
      %s44 = int_to_ptr.hbm [resolvable:$true] %s43
      %s45 = sshll.u32 [#allocation7], 4
      %s46 = int_to_ptr.vmem [resolvable:$true] %s45
      %51 = dma.hbm_to_vmem [thread:$0]  %s44, 2048, %s46, [#allocation6], 128, 128, 8
    $region17: #{dummy_model_finetune_padded.1} parent=1 // pred_fallthru
      _
    // Predicated region
    $region18: #{dummy_model_finetune_padded.1} parent=1 // pred_check
      _
    $region19: #{dummy_model_finetune_padded.1} parent=1 // pred_check_branch
      %53 = sbr.rel (0) target = $region21
    $region20: #{dummy_model_finetune_padded.1} parent=1 // pred_region
      _
    $region21: #{dummy_model_finetune_padded.1} parent=1 // pred_fallthru
      _
    // Predicated region
    $region22: #{dummy_model_finetune_padded.1} parent=1 // pred_check
      _
    $region23: #{dummy_model_finetune_padded.1} parent=1 // pred_check_branch
      %55 = sbr.rel (0) target = $region25
    $region24: #{dummy_model_finetune_padded.1} parent=1 // pred_region
      %57 = dma.done [#allocation3], 128
    $region25: #{dummy_model_finetune_padded.1} parent=1 // pred_fallthru
      _
    // Predicated region
    $region26: #{dummy_model_finetune_padded.1} parent=1 // pred_check
      _
    $region27: #{dummy_model_finetune_padded.1} parent=1 // pred_check_branch
      %59 = sbr.rel (0) target = $region29
    $region28: #{dummy_model_finetune_padded.1} parent=1 // pred_region
      %61 = dma.done [#allocation6], 512
    $region29: #{dummy_model_finetune_padded.1} parent=1 // pred_fallthru
      _
    // Predicated region
    $region30: #{dummy_model_finetune_padded.1} parent=1 // pred_check
      _
    $region31: #{dummy_model_finetune_padded.1} parent=1 // pred_check_branch
      %63 = sbr.rel (0) target = $region33
    $region32: #{dummy_model_finetune_padded.1} parent=1 // pred_region
      %65 = dma.done [#allocation6], 2048
    $region33: #{dummy_model_finetune_padded.1} parent=1 // pred_fallthru
      _
    %v66 = vld [vmem:[#allocation2] sm:$0xff]
    %v67 = vld [vmem:[#allocation5] sm:$0xff]
    %v68 = vld [vmem:[#allocation5 + $0x8] sm:$0xff]
    %v69 = vld [vmem:[#allocation5 + $0x10] sm:$0xff]
    %v70 = vld [vmem:[#allocation5 + $0x18] sm:$0xff]
    %v71 = vld [vmem:[%s2] sm:$0x1]
    %v73 = vperm.slane %v71, 0
    %vm75 = vcmask 261120
    %v77 = vsel %vm75, %v66, 0
    %79 = vmatpush.msra.mxu0 0.0
    %80 = vmatpush.msra.mxu0 0.0
    %81 = vmatpush.msra.mxu0 0.0
    %82 = vmatpush.msra.mxu0 0.0
    %83 = vmatpush.msra.mxu0 0.0
    %84 = vmatpush.msra.mxu0 0.0
    %85 = vmatpush.msra.mxu0 0.0
    %86 = vmatpush.msra.mxu0 0.0
    %87 = vmatpush.msra.mxu0 0.0
    %88 = vmatpush.msra.mxu0 0.0
    %89 = vmatpush.msra.mxu0 0.0
    %90 = vmatpush.msra.mxu0 0.0
    %91 = vmatpush.msra.mxu0 %v70
    %92 = vmatpush.msra.mxu0 %v69
    %93 = vmatpush.msra.mxu0 %v68
    %94 = vmatpush.msra.mxu0 %v67
    %95 = vmatmul.f32.gmra.mxu0 %v77
    %v96 = vpop.f32.mrf.mxu0
    %v97 = vadd.f32 %v73, %v96
    %98 = vdwg.mxu0
    %v99 = vmax.f32 %v97, 0.0
    %v100 = vld [vmem:[#allocation7] sm:$0xff]
    %v101 = vld [vmem:[#allocation7 + $0x8] sm:$0xff]
    %v102 = vld [vmem:[#allocation7 + $0x10] sm:$0xff]
    %v103 = vld [vmem:[#allocation7 + $0x18] sm:$0xff]
    %v104 = vld [vmem:[#allocation7 + $0x20] sm:$0xff]
    %v105 = vld [vmem:[#allocation7 + $0x28] sm:$0xff]
    %v106 = vld [vmem:[#allocation7 + $0x30] sm:$0xff]
    %v107 = vld [vmem:[#allocation7 + $0x38] sm:$0xff]
    %v108 = vld [vmem:[#allocation7 + $0x40] sm:$0xff]
    %v109 = vld [vmem:[#allocation7 + $0x48] sm:$0xff]
    %v110 = vld [vmem:[#allocation7 + $0x50] sm:$0xff]
    %v111 = vld [vmem:[#allocation7 + $0x58] sm:$0xff]
    %v112 = vld [vmem:[#allocation7 + $0x60] sm:$0xff]
    %v113 = vld [vmem:[#allocation7 + $0x68] sm:$0xff]
    %v114 = vld [vmem:[#allocation7 + $0x70] sm:$0xff]
    %v115 = vld [vmem:[#allocation7 + $0x78] sm:$0xff]
    %v116 = vld [vmem:[%s4] sm:$0x1]
    %v118 = vperm.slane %v116, 0
    %120 = vmatpush.msra.mxu0 %v115
    %121 = vmatpush.msra.mxu0 %v114
    %122 = vmatpush.msra.mxu0 %v113
    %123 = vmatpush.msra.mxu0 %v112
    %124 = vmatpush.msra.mxu0 %v111
    %125 = vmatpush.msra.mxu0 %v110
    %126 = vmatpush.msra.mxu0 %v109
    %127 = vmatpush.msra.mxu0 %v108
    %128 = vmatpush.msra.mxu0 %v107
    %129 = vmatpush.msra.mxu0 %v106
    %130 = vmatpush.msra.mxu0 %v105
    %131 = vmatpush.msra.mxu0 %v104
    %132 = vmatpush.msra.mxu0 %v103
    %133 = vmatpush.msra.mxu0 %v102
    %134 = vmatpush.msra.mxu0 %v101
    %135 = vmatpush.msra.mxu0 %v100
    %136 = vmatmul.f32.gmra.mxu0 %v99
    %v137 = vpop.f32.mrf.mxu0
    %v138 = vadd.f32 %v118, %v137
    %139 = vdwg.mxu0
    %140 = vst [vmem:[#allocation8] sm:$0xff] %v138
    // Predicated region
    $region34: #{dummy_model_finetune_padded.1} parent=1 // pred_check
      _
    $region35: #{dummy_model_finetune_padded.1} parent=1 // pred_check_branch
      %142 = sbr.rel (0) target = $region37
    $region36: #{dummy_model_finetune_padded.1} parent=1 // pred_region
      %144 = vsyncadd [#allocation4], 0
      %s146 = sshll.u32 [#allocation8], 4
      %s147 = int_to_ptr.vmem [resolvable:$true] %s146
      %s148 = sshll.u32 %s5, 4
      %s149 = int_to_ptr.hbm [resolvable:$true] %s148
      %151 = dma.vmem_to_hbm [thread:$0]  %s147, 128, %s149, [#allocation4]
    $region37: #{dummy_model_finetune_padded.1} parent=1 // pred_fallthru
      _
    // Predicated region
    $region38: #{dummy_model_finetune_padded.1} parent=1 // pred_check
      _
    $region39: #{dummy_model_finetune_padded.1} parent=1 // pred_check_branch
      %153 = sbr.rel (0) target = $region41
    $region40: #{dummy_model_finetune_padded.1} parent=1 // pred_region
      %155 = dma.done [#allocation4], 128
    $region41: #{dummy_model_finetune_padded.1} parent=1 // pred_fallthru
      _
    %156 = vsyncpa [#allocation3], 1
    %157 = vsyncpa [#allocation6], 1
    %158 = vsyncpa [#allocation4], 1

</llo_original>
